<compile_context>
chip_gen: v5e
topology: v5e:2x2
jax: 0.10.0
libtpu: 0.0.40
codegen_flags: <defaults>
</compile_context>

<pallas_src>
import jax
import jax.numpy as jnp
from jax.experimental import pallas as pl
from jax.experimental.pallas import tpu as pltpu

LN_EPS = 1e-5


def _round_up(x, m):
    return (x + m - 1) // m * m


# ----------------------------- Pallas kernel ------------------------------
# Transposed layout: every activation is (features, TB) with TB on lanes.
#   linear:     y = wT @ x + b          wT: (fan_out, fan_in), b: (fan_out, 1)
#   layernorm:  reduce over axis 0 (features / sublanes), fused stats
#   act:        tanh

def make_ambient_diffusion_kernel(n_hidden):
    def kernel(*refs):
        z_ref = refs[0]
        o_ref = refs[-1]
        p = 1

        x = z_ref[...].astype(jnp.float32)              # (in_dim, TB)

        for _ in range(n_hidden):
            wT_ref, b_ref, g_ref, be_ref = refs[p:p + 4]
            p += 4
            # Linear
            x = jnp.dot(wT_ref[...], x,
                        preferred_element_type=jnp.float32) + b_ref[...]
            # LayerNorm over the feature (sublane) axis, fused one-pass stats.
            mu = jnp.mean(x, axis=0, keepdims=True)       # (1, TB)
            ex2 = jnp.mean(x * x, axis=0, keepdims=True)  # (1, TB)
            var = jnp.maximum(ex2 - mu * mu, 0.0)
            x = (x - mu) * jax.lax.rsqrt(var + LN_EPS) * g_ref[...] + be_ref[...]
            # Activation
            x = jnp.tanh(x)

        # final layer: plain Linear (no norm, no activation)
        wT_ref, b_ref = refs[p:p + 2]
        x = jnp.dot(wT_ref[...], x,
                    preferred_element_type=jnp.float32) + b_ref[...]

        o_ref[...] = x.astype(o_ref.dtype)                # (out_feat, TB)

    return kernel


# ------------------------------ JAX wrapper -------------------------------

def ambient_diffusion_forward(z, params, output_dim, *, max_tile_cols=2048):
    """z: (B, input_dim) -> (B, output_dim, output_dim)."""
    B, in_dim = z.shape
    out_feat = output_dim * output_dim
    n_hidden = len(params) - 1

    # --- flatten + transpose params for the (features, batch) layout ------
    flat_params = []
    for i, layer in enumerate(params):
        w, b = layer[0], layer[1]
        flat_params.append(jnp.asarray(w, jnp.float32).T)           # (fan_out, fan_in)
        flat_params.append(jnp.reshape(jnp.asarray(b, jnp.float32), (-1, 1)))
        if i < n_hidden:
            g, be = layer[2], layer[3]
            flat_params.append(jnp.reshape(jnp.asarray(g, jnp.float32), (-1, 1)))
            flat_params.append(jnp.reshape(jnp.asarray(be, jnp.float32), (-1, 1)))

    # --- batch tiling: lanes are 128-wide, pad only a little ---------------
    B128 = _round_up(B, 128)
    n_tiles = max(1, pl.cdiv(B128, max_tile_cols))
    # Even number of tiles when there's enough work -> balanced v7x megacore.
    if B128 >= 256 and n_tiles % 2 == 1:
        n_tiles += 1
    TB = _round_up(pl.cdiv(B128, n_tiles), 128)
    B_pad = n_tiles * TB
    grid = (n_tiles,)

    # Transposed, lane-padded input (in_dim, B_pad).
    zT = jnp.asarray(z, jnp.float32).T
    if B_pad != B:
        zT = jnp.pad(zT, ((0, 0), (0, B_pad - B)))

    # z / output stream through VMEM in (features, TB) lane-dense tiles.
    z_spec = pl.BlockSpec((in_dim, TB), lambda i: (0, i))
    out_spec = pl.BlockSpec((out_feat, TB), lambda i: (0, i))
    # Params: full-shape blocks, constant block index -> resident in VMEM.
    param_specs = [pl.BlockSpec(p.shape, lambda i: (0, 0)) for p in flat_params]

    # Advisory cost estimate (memory/overhead-bound streaming kernel).
    weight_mats = [layer[0] for layer in params]
    flops = 2 * B_pad * int(sum(w.shape[0] * w.shape[1] for w in weight_mats))
    transcendentals = B_pad * int(sum(w.shape[1] for w in weight_mats[:-1]))
    bytes_accessed = int(
        zT.size * 4
        + B_pad * out_feat * 4
        + sum(p.size * 4 for p in flat_params)
    )

    flat_T = pl.pallas_call(
        make_ambient_diffusion_kernel(n_hidden),
        out_shape=jax.ShapeDtypeStruct((out_feat, B_pad), jnp.float32),
        grid=grid,
        in_specs=[z_spec] + param_specs,
        out_specs=out_spec,
        compiler_params=pltpu.CompilerParams(
            dimension_semantics=("parallel",),  # shard batch tiles across TCs (v7x)
        ),
        cost_estimate=pl.CostEstimate(
            flops=flops,
            transcendentals=transcendentals,
            bytes_accessed=bytes_accessed,
        ),
    )(zT, *flat_params)

    # Drop batch padding, undo the transpose; .view((B, d, d)) equivalent.
    return flat_T[:, :B].T.reshape(B, output_dim, output_dim)


# ------------------------- deterministic parameters ------------------------

def _init_linear(key, fan_in, fan_out):
    kw, kb = jax.random.split(key)
    bound = 1.0 / jnp.sqrt(jnp.float32(fan_in))
    w = jax.random.uniform(kw, (fan_in, fan_out), jnp.float32, -bound, bound)
    b = jax.random.uniform(kb, (1, fan_out), jnp.float32, -bound, bound)
    return w, b


def init_params(key, input_dim, hidden_dims, output_dim):
    neurons = [input_dim] + list(hidden_dims) + [output_dim * output_dim]
    params = []
    keys = jax.random.split(key, len(neurons) - 1)
    for i, k in enumerate(keys):
        fan_in, fan_out = neurons[i], neurons[i + 1]
        w, b = _init_linear(k, fan_in, fan_out)
        if i < len(hidden_dims):  # hidden layer: has LayerNorm params
            gamma = jnp.ones((1, fan_out), jnp.float32)
            beta = jnp.zeros((1, fan_out), jnp.float32)
            params.append((w, b, gamma, beta))
        else:                      # final layer: Linear only
            params.append((w, b))
    return params


# ----------------------------- pure-JAX reference ---------------------------

def reference_forward(z, params, output_dim):
    x = z.astype(jnp.float32)
    n_layers = len(params)
    for i, layer in enumerate(params):
        if i < n_layers - 1:
            w, b, g, be = layer
            x = x @ w + b
            mu = jnp.mean(x, axis=-1, keepdims=True)
            var = jnp.mean((x - mu) ** 2, axis=-1, keepdims=True)
            x = (x - mu) / jnp.sqrt(var + LN_EPS) * g + be
            x = jnp.tanh(x)
        else:
            w, b = layer
            x = x @ w + b
    return x.reshape(z.shape[0], output_dim, output_dim)


# ---------------------------------- main -----------------------------------

if __name__ == "__main__":
    input_dim = 16
    hidden_dims = [32, 32]
    output_dim = 4

    root = jax.random.PRNGKey(0)
    kz, kp, kz2 = jax.random.split(root, 3)
    params = init_params(kp, input_dim, hidden_dims, output_dim)

    # Small case from the module spec (batch=2) — single 128-lane tile.
    batch = 2
    z = jax.random.normal(kz, (batch, input_dim), jnp.float32)
    out = jax.block_until_ready(ambient_diffusion_forward(z, params, output_dim))
    ref = reference_forward(z, params, output_dim)
    assert out.shape == (batch, output_dim, output_dim)
    assert jnp.allclose(out, ref, atol=1e-4, rtol=1e-4), "mismatch vs reference (B=2)"

    # Larger case — exercises multiple batch tiles (even grid) + small padding.
    batch2 = 5000
    z2 = jax.random.normal(kz2, (batch2, input_dim), jnp.float32)
    out2 = jax.block_until_ready(
        ambient_diffusion_forward(z2, params, output_dim, max_tile_cols=2048)
    )
    ref2 = reference_forward(z2, params, output_dim)
    assert out2.shape == (batch2, output_dim, output_dim)
    assert jnp.allclose(out2, ref2, atol=1e-4, rtol=1e-4), "mismatch vs reference (B=5000)"

    print("KERNEL_OK")
</pallas_src>

<mosaic_0001>
module attributes {stable_mosaic.version = 11 : i64} {
  func.func @kernel(%arg0: i32, %arg1: memref<16x128xf32, #tpu.memory_space<vmem>>, %arg2: memref<32x16xf32, #tpu.memory_space<vmem>>, %arg3: memref<32x1xf32, #tpu.memory_space<vmem>>, %arg4: memref<32x1xf32, #tpu.memory_space<vmem>>, %arg5: memref<32x1xf32, #tpu.memory_space<vmem>>, %arg6: memref<32x32xf32, #tpu.memory_space<vmem>>, %arg7: memref<32x1xf32, #tpu.memory_space<vmem>>, %arg8: memref<32x1xf32, #tpu.memory_space<vmem>>, %arg9: memref<32x1xf32, #tpu.memory_space<vmem>>, %arg10: memref<16x32xf32, #tpu.memory_space<vmem>>, %arg11: memref<16x1xf32, #tpu.memory_space<vmem>>, %arg12: memref<16x128xf32, #tpu.memory_space<vmem>>) attributes {dimension_semantics = [#tpu.dimension_semantics<parallel>], iteration_bounds = array<i64: 1>, scalar_prefetch = 0 : i64, scratch_operands = 0 : i64, tpu.core_type = #tpu.core_type<tc>, window_params = [{transform_indices = @transform_0, window_bounds = array<i64: 16, 128>}, {pipeline_mode = #tpu.pipeline_mode<synchronous>, transform_indices = @transform_1, window_bounds = array<i64: 32, 16>}, {pipeline_mode = #tpu.pipeline_mode<synchronous>, transform_indices = @transform_2, window_bounds = array<i64: 32, 1>}, {pipeline_mode = #tpu.pipeline_mode<synchronous>, transform_indices = @transform_3, window_bounds = array<i64: 32, 1>}, {pipeline_mode = #tpu.pipeline_mode<synchronous>, transform_indices = @transform_4, window_bounds = array<i64: 32, 1>}, {pipeline_mode = #tpu.pipeline_mode<synchronous>, transform_indices = @transform_5, window_bounds = array<i64: 32, 32>}, {pipeline_mode = #tpu.pipeline_mode<synchronous>, transform_indices = @transform_6, window_bounds = array<i64: 32, 1>}, {pipeline_mode = #tpu.pipeline_mode<synchronous>, transform_indices = @transform_7, window_bounds = array<i64: 32, 1>}, {pipeline_mode = #tpu.pipeline_mode<synchronous>, transform_indices = @transform_8, window_bounds = array<i64: 32, 1>}, {pipeline_mode = #tpu.pipeline_mode<synchronous>, transform_indices = @transform_9, window_bounds = array<i64: 16, 32>}, {pipeline_mode = #tpu.pipeline_mode<synchronous>, transform_indices = @transform_10, window_bounds = array<i64: 16, 1>}, {transform_indices = @transform_11, window_bounds = array<i64: 16, 128>}]} {
    %c0 = arith.constant 0 : index
    %c0_0 = arith.constant 0 : index
    %0 = vector.load %arg1[%c0, %c0_0] : memref<16x128xf32, #tpu.memory_space<vmem>>, vector<16x128xf32>
    %c0_1 = arith.constant 0 : index
    %c0_2 = arith.constant 0 : index
    %1 = vector.load %arg2[%c0_1, %c0_2] : memref<32x16xf32, #tpu.memory_space<vmem>>, vector<32x16xf32>
    %cst = arith.constant dense<0.000000e+00> : vector<32x128xf32>
    %2 = tpu.matmul %1, %0, %cst {dimension_numbers = #tpu.dot_dimension_numbers<[1], [0], [0], [1], [0, 0, 1, 1], [], []>} : vector<32x16xf32>, vector<16x128xf32>, vector<32x128xf32> -> vector<32x128xf32>
    %c0_3 = arith.constant 0 : index
    %c0_4 = arith.constant 0 : index
    %3 = vector.load %arg3[%c0_3, %c0_4] : memref<32x1xf32, #tpu.memory_space<vmem>>, vector<32x1xf32>
    %4 = vector.broadcast %3 : vector<32x1xf32> to vector<32x128xf32>
    %5 = arith.addf %2, %4 : vector<32x128xf32>
    %cst_5 = arith.constant dense<0.000000e+00> : vector<128xf32>
    %6 = vector.multi_reduction <add>, %5, %cst_5 [0] : vector<32x128xf32> to vector<128xf32>
    %7 = vector.shape_cast %6 : vector<128xf32> to vector<1x128xf32>
    %cst_6 = arith.constant 3.200000e+01 : f32
    %8 = vector.broadcast %cst_6 : f32 to vector<1x128xf32>
    %9 = arith.divf %7, %8 : vector<1x128xf32>
    %10 = arith.mulf %5, %5 : vector<32x128xf32>
    %cst_7 = arith.constant dense<0.000000e+00> : vector<128xf32>
    %11 = vector.multi_reduction <add>, %10, %cst_7 [0] : vector<32x128xf32> to vector<128xf32>
    %12 = vector.shape_cast %11 : vector<128xf32> to vector<1x128xf32>
    %cst_8 = arith.constant 3.200000e+01 : f32
    %13 = vector.broadcast %cst_8 : f32 to vector<1x128xf32>
    %14 = arith.divf %12, %13 : vector<1x128xf32>
    %15 = arith.mulf %9, %9 : vector<1x128xf32>
    %16 = arith.subf %14, %15 : vector<1x128xf32>
    %cst_9 = arith.constant 0.000000e+00 : f32
    %17 = vector.broadcast %cst_9 : f32 to vector<1x128xf32>
    %18 = arith.maximumf %16, %17 : vector<1x128xf32>
    %19 = vector.broadcast %9 : vector<1x128xf32> to vector<32x128xf32>
    %20 = arith.subf %5, %19 : vector<32x128xf32>
    %cst_10 = arith.constant 9.99999974E-6 : f32
    %21 = vector.broadcast %cst_10 : f32 to vector<1x128xf32>
    %22 = arith.addf %18, %21 : vector<1x128xf32>
    %23 = math.rsqrt %22 : vector<1x128xf32>
    %24 = vector.broadcast %23 : vector<1x128xf32> to vector<32x128xf32>
    %25 = arith.mulf %20, %24 : vector<32x128xf32>
    %c0_11 = arith.constant 0 : index
    %c0_12 = arith.constant 0 : index
    %26 = vector.load %arg4[%c0_11, %c0_12] : memref<32x1xf32, #tpu.memory_space<vmem>>, vector<32x1xf32>
    %27 = vector.broadcast %26 : vector<32x1xf32> to vector<32x128xf32>
    %28 = arith.mulf %25, %27 : vector<32x128xf32>
    %c0_13 = arith.constant 0 : index
    %c0_14 = arith.constant 0 : index
    %29 = vector.load %arg5[%c0_13, %c0_14] : memref<32x1xf32, #tpu.memory_space<vmem>>, vector<32x1xf32>
    %30 = vector.broadcast %29 : vector<32x1xf32> to vector<32x128xf32>
    %31 = arith.addf %28, %30 : vector<32x128xf32>
    %32 = math.tanh %31 : vector<32x128xf32>
    %c0_15 = arith.constant 0 : index
    %c0_16 = arith.constant 0 : index
    %33 = vector.load %arg6[%c0_15, %c0_16] : memref<32x32xf32, #tpu.memory_space<vmem>>, vector<32x32xf32>
    %cst_17 = arith.constant dense<0.000000e+00> : vector<32x128xf32>
    %34 = tpu.matmul %33, %32, %cst_17 {dimension_numbers = #tpu.dot_dimension_numbers<[1], [0], [0], [1], [0, 0, 1, 1], [], []>} : vector<32x32xf32>, vector<32x128xf32>, vector<32x128xf32> -> vector<32x128xf32>
    %c0_18 = arith.constant 0 : index
    %c0_19 = arith.constant 0 : index
    %35 = vector.load %arg7[%c0_18, %c0_19] : memref<32x1xf32, #tpu.memory_space<vmem>>, vector<32x1xf32>
    %36 = vector.broadcast %35 : vector<32x1xf32> to vector<32x128xf32>
    %37 = arith.addf %34, %36 : vector<32x128xf32>
    %cst_20 = arith.constant dense<0.000000e+00> : vector<128xf32>
    %38 = vector.multi_reduction <add>, %37, %cst_20 [0] : vector<32x128xf32> to vector<128xf32>
    %39 = vector.shape_cast %38 : vector<128xf32> to vector<1x128xf32>
    %cst_21 = arith.constant 3.200000e+01 : f32
    %40 = vector.broadcast %cst_21 : f32 to vector<1x128xf32>
    %41 = arith.divf %39, %40 : vector<1x128xf32>
    %42 = arith.mulf %37, %37 : vector<32x128xf32>
    %cst_22 = arith.constant dense<0.000000e+00> : vector<128xf32>
    %43 = vector.multi_reduction <add>, %42, %cst_22 [0] : vector<32x128xf32> to vector<128xf32>
    %44 = vector.shape_cast %43 : vector<128xf32> to vector<1x128xf32>
    %cst_23 = arith.constant 3.200000e+01 : f32
    %45 = vector.broadcast %cst_23 : f32 to vector<1x128xf32>
    %46 = arith.divf %44, %45 : vector<1x128xf32>
    %47 = arith.mulf %41, %41 : vector<1x128xf32>
    %48 = arith.subf %46, %47 : vector<1x128xf32>
    %cst_24 = arith.constant 0.000000e+00 : f32
    %49 = vector.broadcast %cst_24 : f32 to vector<1x128xf32>
    %50 = arith.maximumf %48, %49 : vector<1x128xf32>
    %51 = vector.broadcast %41 : vector<1x128xf32> to vector<32x128xf32>
    %52 = arith.subf %37, %51 : vector<32x128xf32>
    %cst_25 = arith.constant 9.99999974E-6 : f32
    %53 = vector.broadcast %cst_25 : f32 to vector<1x128xf32>
    %54 = arith.addf %50, %53 : vector<1x128xf32>
    %55 = math.rsqrt %54 : vector<1x128xf32>
    %56 = vector.broadcast %55 : vector<1x128xf32> to vector<32x128xf32>
    %57 = arith.mulf %52, %56 : vector<32x128xf32>
    %c0_26 = arith.constant 0 : index
    %c0_27 = arith.constant 0 : index
    %58 = vector.load %arg8[%c0_26, %c0_27] : memref<32x1xf32, #tpu.memory_space<vmem>>, vector<32x1xf32>
    %59 = vector.broadcast %58 : vector<32x1xf32> to vector<32x128xf32>
    %60 = arith.mulf %57, %59 : vector<32x128xf32>
    %c0_28 = arith.constant 0 : index
    %c0_29 = arith.constant 0 : index
    %61 = vector.load %arg9[%c0_28, %c0_29] : memref<32x1xf32, #tpu.memory_space<vmem>>, vector<32x1xf32>
    %62 = vector.broadcast %61 : vector<32x1xf32> to vector<32x128xf32>
    %63 = arith.addf %60, %62 : vector<32x128xf32>
    %64 = math.tanh %63 : vector<32x128xf32>
    %c0_30 = arith.constant 0 : index
    %c0_31 = arith.constant 0 : index
    %65 = vector.load %arg10[%c0_30, %c0_31] : memref<16x32xf32, #tpu.memory_space<vmem>>, vector<16x32xf32>
    %cst_32 = arith.constant dense<0.000000e+00> : vector<16x128xf32>
    %66 = tpu.matmul %65, %64, %cst_32 {dimension_numbers = #tpu.dot_dimension_numbers<[1], [0], [0], [1], [0, 0, 1, 1], [], []>} : vector<16x32xf32>, vector<32x128xf32>, vector<16x128xf32> -> vector<16x128xf32>
    %c0_33 = arith.constant 0 : index
    %c0_34 = arith.constant 0 : index
    %67 = vector.load %arg11[%c0_33, %c0_34] : memref<16x1xf32, #tpu.memory_space<vmem>>, vector<16x1xf32>
    %68 = vector.broadcast %67 : vector<16x1xf32> to vector<16x128xf32>
    %69 = arith.addf %66, %68 : vector<16x128xf32>
    %c0_35 = arith.constant 0 : index
    %c0_36 = arith.constant 0 : index
    %70 = vector.load %arg12[%c0_35, %c0_36] : memref<16x128xf32, #tpu.memory_space<vmem>>, vector<16x128xf32>
    tpu.vector_store %arg12[%c0_35, %c0_36], %69 {strides = array<i32>} : memref<16x128xf32, #tpu.memory_space<vmem>>, vector<16x128xf32>,
    return
  }
  func.func @transform_0(%arg0: i32) -> (i32, i32) {
    %c0_i32 = arith.constant 0 : i32
    %c0_i32_0 = arith.constant 0 : i32
    return %c0_i32, %arg0 : i32, i32
  }
  func.func @transform_1(%arg0: i32) -> (i32, i32) {
    %c0_i32 = arith.constant 0 : i32
    %c0_i32_0 = arith.constant 0 : i32
    %c0_i32_1 = arith.constant 0 : i32
    return %c0_i32, %c0_i32_0 : i32, i32
  }
  func.func @transform_2(%arg0: i32) -> (i32, i32) {
    %c0_i32 = arith.constant 0 : i32
    %c0_i32_0 = arith.constant 0 : i32
    %c0_i32_1 = arith.constant 0 : i32
    return %c0_i32, %c0_i32_0 : i32, i32
  }
  func.func @transform_3(%arg0: i32) -> (i32, i32) {
    %c0_i32 = arith.constant 0 : i32
    %c0_i32_0 = arith.constant 0 : i32
    %c0_i32_1 = arith.constant 0 : i32
    return %c0_i32, %c0_i32_0 : i32, i32
  }
  func.func @transform_4(%arg0: i32) -> (i32, i32) {
    %c0_i32 = arith.constant 0 : i32
    %c0_i32_0 = arith.constant 0 : i32
    %c0_i32_1 = arith.constant 0 : i32
    return %c0_i32, %c0_i32_0 : i32, i32
  }
  func.func @transform_5(%arg0: i32) -> (i32, i32) {
    %c0_i32 = arith.constant 0 : i32
    %c0_i32_0 = arith.constant 0 : i32
    %c0_i32_1 = arith.constant 0 : i32
    return %c0_i32, %c0_i32_0 : i32, i32
  }
  func.func @transform_6(%arg0: i32) -> (i32, i32) {
    %c0_i32 = arith.constant 0 : i32
    %c0_i32_0 = arith.constant 0 : i32
    %c0_i32_1 = arith.constant 0 : i32
    return %c0_i32, %c0_i32_0 : i32, i32
  }
  func.func @transform_7(%arg0: i32) -> (i32, i32) {
    %c0_i32 = arith.constant 0 : i32
    %c0_i32_0 = arith.constant 0 : i32
    %c0_i32_1 = arith.constant 0 : i32
    return %c0_i32, %c0_i32_0 : i32, i32
  }
  func.func @transform_8(%arg0: i32) -> (i32, i32) {
    %c0_i32 = arith.constant 0 : i32
    %c0_i32_0 = arith.constant 0 : i32
    %c0_i32_1 = arith.constant 0 : i32
    return %c0_i32, %c0_i32_0 : i32, i32
  }
  func.func @transform_9(%arg0: i32) -> (i32, i32) {
    %c0_i32 = arith.constant 0 : i32
    %c0_i32_0 = arith.constant 0 : i32
    %c0_i32_1 = arith.constant 0 : i32
    return %c0_i32, %c0_i32_0 : i32, i32
  }
  func.func @transform_10(%arg0: i32) -> (i32, i32) {
    %c0_i32 = arith.constant 0 : i32
    %c0_i32_0 = arith.constant 0 : i32
    %c0_i32_1 = arith.constant 0 : i32
    return %c0_i32, %c0_i32_0 : i32, i32
  }
  func.func @transform_11(%arg0: i32) -> (i32, i32) {
    %c0_i32 = arith.constant 0 : i32
    %c0_i32_0 = arith.constant 0 : i32
    return %c0_i32, %arg0 : i32, i32
  }
}

</mosaic_0001>

<llo_original>
// kernel: tpu_custom_call.1
$region0: #{tpu_custom_call.1}
  #allocation0 [shape = 'u32[]', space=smem, size = 0x4, offset = 0x4, fixed_abs, tag = 'smem constant byte address 0x4 - core index']
  #allocation1 [shape = 'u32[72,128]{1,0:T(1,128)}', space=vmem, size = 0x9000, scoped, tag = 'internal scratch']
  %s0 = inlined_call_operand.vmem [shape: f32[16,128], index: 0, kind: input, shape index: {}]
  %s1 = inlined_call_operand.vmem [shape: f32[32,16], index: 1, kind: input, shape index: {}]
  %s2 = inlined_call_operand.vmem [shape: f32[32,1], index: 2, kind: input, shape index: {}]
  %s3 = inlined_call_operand.vmem [shape: f32[32,1], index: 3, kind: input, shape index: {}]
  %s4 = inlined_call_operand.vmem [shape: f32[32,1], index: 4, kind: input, shape index: {}]
  %s5 = inlined_call_operand.vmem [shape: f32[32,32], index: 5, kind: input, shape index: {}]
  %s6 = inlined_call_operand.vmem [shape: f32[32,1], index: 6, kind: input, shape index: {}]
  %s7 = inlined_call_operand.vmem [shape: f32[32,1], index: 7, kind: input, shape index: {}]
  %s8 = inlined_call_operand.vmem [shape: f32[32,1], index: 8, kind: input, shape index: {}]
  %s9 = inlined_call_operand.vmem [shape: f32[16,32], index: 9, kind: input, shape index: {}]
  %s10 = inlined_call_operand.vmem [shape: f32[16,1], index: 10, kind: input, shape index: {}]
  %s11 = inlined_call_operand.hbm [shape: f32[16,128], index: 11, kind: output, shape index: {}]
  %s12 = sld [smem:[#allocation0]]
  $region54: #{tpu_custom_call.1} parent=0
    _
  %s14 = ssub.s32 1, %s12
  %s15 = scalar_select 0, %s14, %s12
  $region1: #{tpu_custom_call.1} parent=0
    #allocation2 [shape = 'u8[8192]{0}', space=vmem, size = 0x2000, scoped, tag = 'output window, operand 0, single buffered']
    #allocation3 [shape = 's32[1]{0}', space=sflag, size = 0x4, scoped, tag = 'scoped memory for tpu_custom_call.1']
    %16 = vsyncpa [#allocation3], 0
    // Predicated region
    $region2: #{tpu_custom_call.1} parent=1 // pred_check
      _
    $region3: #{tpu_custom_call.1} parent=1 // pred_check_branch
      %18 = sbr.rel (0) target = $region5
    $region4: #{tpu_custom_call.1} parent=1 // pred_region
      _
    $region5: #{tpu_custom_call.1} parent=1 // pred_fallthru
      _
    // Predicated region
    $region6: #{tpu_custom_call.1} parent=1 // pred_check
      _
    $region7: #{tpu_custom_call.1} parent=1 // pred_check_branch
      %20 = sbr.rel (0) target = $region9
    $region8: #{tpu_custom_call.1} parent=1 // pred_region
      _
    $region9: #{tpu_custom_call.1} parent=1 // pred_fallthru
      _
    // Predicated region
    $region10: #{tpu_custom_call.1} parent=1 // pred_check
      _
    $region11: #{tpu_custom_call.1} parent=1 // pred_check_branch
      %22 = sbr.rel (0) target = $region13
    $region12: #{tpu_custom_call.1} parent=1 // pred_region
      _
    $region13: #{tpu_custom_call.1} parent=1 // pred_fallthru
      _
    // Predicated region
    $region14: #{tpu_custom_call.1} parent=1 // pred_check
      _
    $region15: #{tpu_custom_call.1} parent=1 // pred_check_branch
      %24 = sbr.rel (0) target = $region17
    $region16: #{tpu_custom_call.1} parent=1 // pred_region
      _
    $region17: #{tpu_custom_call.1} parent=1 // pred_fallthru
      _
    // Predicated region
    $region18: #{tpu_custom_call.1} parent=1 // pred_check
      _
    $region19: #{tpu_custom_call.1} parent=1 // pred_check_branch
      %26 = sbr.rel (0) target = $region21
    $region20: #{tpu_custom_call.1} parent=1 // pred_region
      _
    $region21: #{tpu_custom_call.1} parent=1 // pred_fallthru
      _
    // Predicated region
    $region22: #{tpu_custom_call.1} parent=1 // pred_check
      _
    $region23: #{tpu_custom_call.1} parent=1 // pred_check_branch
      %28 = sbr.rel (0) target = $region25
    $region24: #{tpu_custom_call.1} parent=1 // pred_region
      _
    $region25: #{tpu_custom_call.1} parent=1 // pred_fallthru
      _
    // Predicated region
    $region26: #{tpu_custom_call.1} parent=1 // pred_check
      _
    $region27: #{tpu_custom_call.1} parent=1 // pred_check_branch
      %30 = sbr.rel (0) target = $region29
    $region28: #{tpu_custom_call.1} parent=1 // pred_region
      _
    $region29: #{tpu_custom_call.1} parent=1 // pred_fallthru
      _
    // Predicated region
    $region30: #{tpu_custom_call.1} parent=1 // pred_check
      _
    $region31: #{tpu_custom_call.1} parent=1 // pred_check_branch
      %32 = sbr.rel (0) target = $region33
    $region32: #{tpu_custom_call.1} parent=1 // pred_region
      _
    $region33: #{tpu_custom_call.1} parent=1 // pred_fallthru
      _
    // Predicated region
    $region34: #{tpu_custom_call.1} parent=1 // pred_check
      _
    $region35: #{tpu_custom_call.1} parent=1 // pred_check_branch
      %34 = sbr.rel (0) target = $region37
    $region36: #{tpu_custom_call.1} parent=1 // pred_region
      _
    $region37: #{tpu_custom_call.1} parent=1 // pred_fallthru
      _
    // Predicated region
    $region38: #{tpu_custom_call.1} parent=1 // pred_check
      _
    $region39: #{tpu_custom_call.1} parent=1 // pred_check_branch
      %36 = sbr.rel (0) target = $region41
    $region40: #{tpu_custom_call.1} parent=1 // pred_region
      _
    $region41: #{tpu_custom_call.1} parent=1 // pred_fallthru
      _
    // Predicated region
    $region42: #{tpu_custom_call.1} parent=1 // pred_check
      _
    $region43: #{tpu_custom_call.1} parent=1 // pred_check_branch
      %38 = sbr.rel (0) target = $region45
    $region44: #{tpu_custom_call.1} parent=1 // pred_region
      _
    $region45: #{tpu_custom_call.1} parent=1 // pred_fallthru
      _
    %v39 = vld [vmem:[%s0] sm:$0xff]
    %v40 = vld [vmem:[%s0 + $0x8] sm:$0xff]
    %v41 = vld [vmem:[%s1] sm:$0xff]
    %v42 = vld [vmem:[%s1 + $0x8] sm:$0xff]
    %v43 = vld [vmem:[%s1 + $0x10] sm:$0xff]
    %v44 = vld [vmem:[%s1 + $0x18] sm:$0xff]
    %v45 = vld [vmem:[%s2] sm:$0xff]
    %v46 = vld [vmem:[%s2 + $0x8] sm:$0xff]
    %v47 = vld [vmem:[%s2 + $0x10] sm:$0xff]
    %v48 = vld [vmem:[%s2 + $0x18] sm:$0xff]
    %50 = vset.pattern.permute.xlu0 0
    %51 = vperm.xlu0 %50, %v45
    %v52 = vpop.permute.xlu0 %51
    %55 = vset.pattern.permute.xlu0 0
    %56 = vperm.xlu0 %55, %v46
    %v57 = vpop.permute.xlu0 %56
    %60 = vset.pattern.permute.xlu0 0
    %61 = vperm.xlu0 %60, %v47
    %v62 = vpop.permute.xlu0 %61
    %65 = vset.pattern.permute.xlu0 0
    %66 = vperm.xlu0 %65, %v48
    %v67 = vpop.permute.xlu0 %66
    %vm69 = vcmask 130048
    %v71 = vsel %vm69, %v41, 0
    %v74 = vsel %vm69, %v42, 0
    %v77 = vsel %vm69, %v43, 0
    %v80 = vsel %vm69, %v44, 0
    %82 = vmatpush.msra.mxu0 0.0
    %83 = vmatpush.msra.mxu0 0.0
    %84 = vmatpush.msra.mxu0 0.0
    %85 = vmatpush.msra.mxu0 0.0
    %86 = vmatpush.msra.mxu0 0.0
    %87 = vmatpush.msra.mxu0 0.0
    %88 = vmatpush.msra.mxu0 0.0
    %89 = vmatpush.msra.mxu0 0.0
    %90 = vmatpush.msra.mxu0 0.0
    %91 = vmatpush.msra.mxu0 0.0
    %92 = vmatpush.msra.mxu0 0.0
    %93 = vmatpush.msra.mxu0 0.0
    %94 = vmatpush.msra.mxu0 0.0
    %95 = vmatpush.msra.mxu0 0.0
    %96 = vmatpush.msra.mxu0 %v40
    %97 = vmatpush.msra.mxu0 %v39
    %98 = vmatmul.f32.gmra.mxu0 %v71
    %v99 = vpop.f32.mrf.mxu0
    %v100 = vadd.f32 %v52, %v99
    %101 = vmatmul.f32.gmra.mxu0 %v74
    %v102 = vpop.f32.mrf.mxu0
    %v103 = vadd.f32 %v57, %v102
    %104 = vmatmul.f32.gmra.mxu0 %v77
    %v105 = vpop.f32.mrf.mxu0
    %v106 = vadd.f32 %v62, %v105
    %107 = vmatmul.f32.gmra.mxu0 %v80
    %v108 = vpop.f32.mrf.mxu0
    %v109 = vadd.f32 %v67, %v108
    %110 = vdwg.mxu0
    %v111 = vadd.f32 %v100, %v103
    %v112 = vadd.f32 %v111, %v106
    %v113 = vadd.f32 %v112, %v109
    %v114 = vrot.slane %v113, 4
    %v115 = vadd.f32 %v113, %v114
    %v116 = vrot.slane %v115, 2
    %v117 = vadd.f32 %v115, %v116
    %v118 = vrot.slane %v117, 1
    %v119 = vadd.f32 %v117, %v118
    %v120 = vrcp.pop 32.0
    %v121 = vmul.f32 32.0, %v120
    %v122 = vsub.f32 1.0, %v121
    %v123 = vmul.f32 %v120, %v122
    %v124 = vadd.f32 %v120, %v123
    %vm125 = vweird.f32 %v120
    %v126 = vsel %vm125, %v120, %v124
    %v127 = vmul.f32 %v119, %v126
    %v128 = vmul.f32 %v100, %v100
    %v129 = vmul.f32 %v103, %v103
    %v130 = vmul.f32 %v106, %v106
    %v131 = vmul.f32 %v109, %v109
    %v132 = vadd.f32 %v128, %v129
    %v133 = vadd.f32 %v132, %v130
    %v134 = vadd.f32 %v133, %v131
    %v135 = vrot.slane %v134, 4
    %v136 = vadd.f32 %v134, %v135
    %v137 = vrot.slane %v136, 2
    %v138 = vadd.f32 %v136, %v137
    %v139 = vrot.slane %v138, 1
    %v140 = vadd.f32 %v138, %v139
    %v141 = vmul.f32 %v140, %v126
    %v142 = vmul.f32 %v127, %v127
    %v143 = vsub.f32 %v141, %v142
    %v144 = vmax.f32 %v143, 0.0
    %v145 = vsub.f32 %v100, %v127
    %v146 = vsub.f32 %v103, %v127
    %v147 = vsub.f32 %v106, %v127
    %v148 = vsub.f32 %v109, %v127
    %v149 = vadd.f32 %v144, 1e-05
    %v150 = vrsqrt.pop %v149
    %v151 = vmul.f32 %v150, %v149
    %v152 = vmul.f32 %v151, %v150
    %v153 = vmul.f32 0.5, %v152
    %v154 = vsub.f32 1.5, %v153
    %v155 = vmul.f32 %v150, %v154
    %vm156 = vweird.f32 %v149
    %vm157 = vweird.f32 %v150
    %vm158 = vmor %vm156, %vm157
    %v159 = vsel %vm158, %v150, %v155
    %v160 = vmul.f32 %v145, %v159
    %v161 = vmul.f32 %v146, %v159
    %v162 = vmul.f32 %v147, %v159
    %v163 = vmul.f32 %v148, %v159
    %v164 = vld [vmem:[%s3] sm:$0xff]
    %v165 = vld [vmem:[%s3 + $0x8] sm:$0xff]
    %v166 = vld [vmem:[%s3 + $0x10] sm:$0xff]
    %v167 = vld [vmem:[%s3 + $0x18] sm:$0xff]
    %169 = vset.pattern.permute.xlu0 0
    %170 = vperm.xlu0 %169, %v164
    %v171 = vpop.permute.xlu0 %170
    %174 = vset.pattern.permute.xlu0 0
    %175 = vperm.xlu0 %174, %v165
    %v176 = vpop.permute.xlu0 %175
    %179 = vset.pattern.permute.xlu0 0
    %180 = vperm.xlu0 %179, %v166
    %v181 = vpop.permute.xlu0 %180
    %184 = vset.pattern.permute.xlu0 0
    %185 = vperm.xlu0 %184, %v167
    %v186 = vpop.permute.xlu0 %185
    %v188 = vmul.f32 %v160, %v171
    %v189 = vmul.f32 %v161, %v176
    %v190 = vmul.f32 %v162, %v181
    %v191 = vmul.f32 %v163, %v186
    %v192 = vld [vmem:[%s4] sm:$0xff]
    %v193 = vld [vmem:[%s4 + $0x8] sm:$0xff]
    %v194 = vld [vmem:[%s4 + $0x10] sm:$0xff]
    %v195 = vld [vmem:[%s4 + $0x18] sm:$0xff]
    %197 = vset.pattern.permute.xlu0 0
    %198 = vperm.xlu0 %197, %v192
    %v199 = vpop.permute.xlu0 %198
    %202 = vset.pattern.permute.xlu0 0
    %203 = vperm.xlu0 %202, %v193
    %v204 = vpop.permute.xlu0 %203
    %207 = vset.pattern.permute.xlu0 0
    %208 = vperm.xlu0 %207, %v194
    %v209 = vpop.permute.xlu0 %208
    %212 = vset.pattern.permute.xlu0 0
    %213 = vperm.xlu0 %212, %v195
    %v214 = vpop.permute.xlu0 %213
    %v216 = vadd.f32 %v188, %v199
    %v217 = vadd.f32 %v189, %v204
    %v218 = vadd.f32 %v190, %v209
    %v219 = vadd.f32 %v191, %v214
    %v220 = vtanh.pop %v216
    %v221 = vtanh.pop %v217
    %v222 = vtanh.pop %v218
    %v223 = vtanh.pop %v219
    %v224 = vld [vmem:[%s5] sm:$0xff]
    %v225 = vld [vmem:[%s5 + $0x8] sm:$0xff]
    %v226 = vld [vmem:[%s5 + $0x10] sm:$0xff]
    %v227 = vld [vmem:[%s5 + $0x18] sm:$0xff]
    %v228 = vld [vmem:[%s6] sm:$0xff]
    %v229 = vld [vmem:[%s6 + $0x8] sm:$0xff]
    %v230 = vld [vmem:[%s6 + $0x10] sm:$0xff]
    %v231 = vld [vmem:[%s6 + $0x18] sm:$0xff]
    %233 = vset.pattern.permute.xlu0 0
    %234 = vperm.xlu0 %233, %v228
    %v235 = vpop.permute.xlu0 %234
    %238 = vset.pattern.permute.xlu0 0
    %239 = vperm.xlu0 %238, %v229
    %v240 = vpop.permute.xlu0 %239
    %243 = vset.pattern.permute.xlu0 0
    %244 = vperm.xlu0 %243, %v230
    %v245 = vpop.permute.xlu0 %244
    %248 = vset.pattern.permute.xlu0 0
    %249 = vperm.xlu0 %248, %v231
    %v250 = vpop.permute.xlu0 %249
    %vm252 = vcmask 261120
    %v254 = vsel %vm252, %v224, 0
    %v257 = vsel %vm252, %v225, 0
    %v260 = vsel %vm252, %v226, 0
    %v263 = vsel %vm252, %v227, 0
    %265 = vmatpush.msra.mxu0 0.0
    %266 = vmatpush.msra.mxu0 0.0
    %267 = vmatpush.msra.mxu0 0.0
    %268 = vmatpush.msra.mxu0 0.0
    %269 = vmatpush.msra.mxu0 0.0
    %270 = vmatpush.msra.mxu0 0.0
    %271 = vmatpush.msra.mxu0 0.0
    %272 = vmatpush.msra.mxu0 0.0
    %273 = vmatpush.msra.mxu0 0.0
    %274 = vmatpush.msra.mxu0 0.0
    %275 = vmatpush.msra.mxu0 0.0
    %276 = vmatpush.msra.mxu0 0.0
    %277 = vmatpush.msra.mxu0 %v223
    %278 = vmatpush.msra.mxu0 %v222
    %279 = vmatpush.msra.mxu0 %v221
    %280 = vmatpush.msra.mxu0 %v220
    %281 = vmatmul.f32.gmra.mxu0 %v254
    %v282 = vpop.f32.mrf.mxu0
    %v283 = vadd.f32 %v235, %v282
    %284 = vmatmul.f32.gmra.mxu0 %v257
    %v285 = vpop.f32.mrf.mxu0
    %v286 = vadd.f32 %v240, %v285
    %287 = vmatmul.f32.gmra.mxu0 %v260
    %v288 = vpop.f32.mrf.mxu0
    %v289 = vadd.f32 %v245, %v288
    %290 = vmatmul.f32.gmra.mxu0 %v263
    %v291 = vpop.f32.mrf.mxu0
    %v292 = vadd.f32 %v250, %v291
    %293 = vdwg.mxu0
    %v294 = vadd.f32 %v283, %v286
    %v295 = vadd.f32 %v294, %v289
    %v296 = vadd.f32 %v295, %v292
    %v297 = vrot.slane %v296, 4
    %v298 = vadd.f32 %v296, %v297
    %v299 = vrot.slane %v298, 2
    %v300 = vadd.f32 %v298, %v299
    %v301 = vrot.slane %v300, 1
    %v302 = vadd.f32 %v300, %v301
    %v303 = vmul.f32 %v302, %v126
    %v304 = vmul.f32 %v283, %v283
    %v305 = vmul.f32 %v286, %v286
    %v306 = vmul.f32 %v289, %v289
    %v307 = vmul.f32 %v292, %v292
    %v308 = vadd.f32 %v304, %v305
    %v309 = vadd.f32 %v308, %v306
    %v310 = vadd.f32 %v309, %v307
    %v311 = vrot.slane %v310, 4
    %v312 = vadd.f32 %v310, %v311
    %v313 = vrot.slane %v312, 2
    %v314 = vadd.f32 %v312, %v313
    %v315 = vrot.slane %v314, 1
    %v316 = vadd.f32 %v314, %v315
    %v317 = vmul.f32 %v316, %v126
    %v318 = vmul.f32 %v303, %v303
    %v319 = vsub.f32 %v317, %v318
    %v320 = vmax.f32 %v319, 0.0
    %v321 = vsub.f32 %v283, %v303
    %v322 = vsub.f32 %v286, %v303
    %v323 = vsub.f32 %v289, %v303
    %v324 = vsub.f32 %v292, %v303
    %v325 = vadd.f32 %v320, 1e-05
    %v326 = vrsqrt.pop %v325
    %v327 = vmul.f32 %v326, %v325
    %v328 = vmul.f32 %v327, %v326
    %v329 = vmul.f32 0.5, %v328
    %v330 = vsub.f32 1.5, %v329
    %v331 = vmul.f32 %v326, %v330
    %vm332 = vweird.f32 %v325
    %vm333 = vweird.f32 %v326
    %vm334 = vmor %vm332, %vm333
    %v335 = vsel %vm334, %v326, %v331
    %v336 = vmul.f32 %v321, %v335
    %v337 = vmul.f32 %v322, %v335
    %v338 = vmul.f32 %v323, %v335
    %v339 = vmul.f32 %v324, %v335
    %v340 = vld [vmem:[%s7] sm:$0xff]
    %v341 = vld [vmem:[%s7 + $0x8] sm:$0xff]
    %v342 = vld [vmem:[%s7 + $0x10] sm:$0xff]
    %v343 = vld [vmem:[%s7 + $0x18] sm:$0xff]
    %345 = vset.pattern.permute.xlu0 0
    %346 = vperm.xlu0 %345, %v340
    %v347 = vpop.permute.xlu0 %346
    %350 = vset.pattern.permute.xlu0 0
    %351 = vperm.xlu0 %350, %v341
    %v352 = vpop.permute.xlu0 %351
    %355 = vset.pattern.permute.xlu0 0
    %356 = vperm.xlu0 %355, %v342
    %v357 = vpop.permute.xlu0 %356
    %360 = vset.pattern.permute.xlu0 0
    %361 = vperm.xlu0 %360, %v343
    %v362 = vpop.permute.xlu0 %361
    %v364 = vmul.f32 %v336, %v347
    %v365 = vmul.f32 %v337, %v352
    %v366 = vmul.f32 %v338, %v357
    %v367 = vmul.f32 %v339, %v362
    %v368 = vld [vmem:[%s8] sm:$0xff]
    %v369 = vld [vmem:[%s8 + $0x8] sm:$0xff]
    %v370 = vld [vmem:[%s8 + $0x10] sm:$0xff]
    %v371 = vld [vmem:[%s8 + $0x18] sm:$0xff]
    %373 = vset.pattern.permute.xlu0 0
    %374 = vperm.xlu0 %373, %v368
    %v375 = vpop.permute.xlu0 %374
    %378 = vset.pattern.permute.xlu0 0
    %379 = vperm.xlu0 %378, %v369
    %v380 = vpop.permute.xlu0 %379
    %383 = vset.pattern.permute.xlu0 0
    %384 = vperm.xlu0 %383, %v370
    %v385 = vpop.permute.xlu0 %384
    %388 = vset.pattern.permute.xlu0 0
    %389 = vperm.xlu0 %388, %v371
    %v390 = vpop.permute.xlu0 %389
    %v392 = vadd.f32 %v364, %v375
    %v393 = vadd.f32 %v365, %v380
    %v394 = vadd.f32 %v366, %v385
    %v395 = vadd.f32 %v367, %v390
    %v396 = vtanh.pop %v392
    %v397 = vtanh.pop %v393
    %v398 = vtanh.pop %v394
    %v399 = vtanh.pop %v395
    %v400 = vld [vmem:[%s9] sm:$0xff]
    %v401 = vld [vmem:[%s9 + $0x8] sm:$0xff]
    %v402 = vld [vmem:[%s10] sm:$0xff]
    %v403 = vld [vmem:[%s10 + $0x8] sm:$0xff]
    %405 = vset.pattern.permute.xlu0 0
    %406 = vperm.xlu0 %405, %v402
    %v407 = vpop.permute.xlu0 %406
    %410 = vset.pattern.permute.xlu0 0
    %411 = vperm.xlu0 %410, %v403
    %v412 = vpop.permute.xlu0 %411
    %v415 = vsel %vm252, %v400, 0
    %v418 = vsel %vm252, %v401, 0
    %420 = vmatpush.msra.mxu0 0.0
    %421 = vmatpush.msra.mxu0 0.0
    %422 = vmatpush.msra.mxu0 0.0
    %423 = vmatpush.msra.mxu0 0.0
    %424 = vmatpush.msra.mxu0 0.0
    %425 = vmatpush.msra.mxu0 0.0
    %426 = vmatpush.msra.mxu0 0.0
    %427 = vmatpush.msra.mxu0 0.0
    %428 = vmatpush.msra.mxu0 0.0
    %429 = vmatpush.msra.mxu0 0.0
    %430 = vmatpush.msra.mxu0 0.0
    %431 = vmatpush.msra.mxu0 0.0
    %432 = vmatpush.msra.mxu0 %v399
    %433 = vmatpush.msra.mxu0 %v398
    %434 = vmatpush.msra.mxu0 %v397
    %435 = vmatpush.msra.mxu0 %v396
    %436 = vmatmul.f32.gmra.mxu0 %v415
    %v437 = vpop.f32.mrf.mxu0
    %v438 = vadd.f32 %v407, %v437
    %439 = vmatmul.f32.gmra.mxu0 %v418
    %v440 = vpop.f32.mrf.mxu0
    %v441 = vadd.f32 %v412, %v440
    %442 = vdwg.mxu0
    %443 = vst [vmem:[#allocation2] sm:$0xff] %v438
    %444 = vst [vmem:[#allocation2 + $0x8] sm:$0xff] %v441
    // Predicated region
    $region46: #{tpu_custom_call.1} parent=1 // pred_check
      _
    $region47: #{tpu_custom_call.1} parent=1 // pred_check_branch
      %446 = sbr.rel (0) target = $region49
    $region48: #{tpu_custom_call.1} parent=1 // pred_region
      %448 = vsyncadd [#allocation3], 0
      %s449 = sshll.u32 [#allocation2], 4
      %s450 = int_to_ptr.vmem [resolvable:$true] %s449
      %s451 = sshll.u32 %s11, 4
      %s452 = int_to_ptr.hbm [resolvable:$true] %s451
      %457 = dma.vmem_to_hbm [thread:$0]  %s450, 256, %s452, [#allocation3], 128, 128, 8
    $region49: #{tpu_custom_call.1} parent=1 // pred_fallthru
      _
    // Predicated region
    $region50: #{tpu_custom_call.1} parent=1 // pred_check
      _
    $region51: #{tpu_custom_call.1} parent=1 // pred_check_branch
      %459 = sbr.rel (0) target = $region53
    $region52: #{tpu_custom_call.1} parent=1 // pred_region
      %461 = dma.done [#allocation3], 256
    $region53: #{tpu_custom_call.1} parent=1 // pred_fallthru
      _
    %462 = vsyncpa [#allocation3], 1

</llo_original>
